<compile_context>
chip_gen: v5e
topology: v5e:2x2
jax: 0.10.0
libtpu: 0.0.40
codegen_flags: <defaults>
</compile_context>

<pallas_src>
import jax
import jax.numpy as jnp
from jax.experimental import pallas as pl
from jax.experimental.pallas import tpu as pltpu


def _chomp_copy_kernel(x_ref, o_ref):
    # Keep only the first L_out (= o_ref.shape[-1], static) columns of the
    # input tile.  When the input and output tiles have the same width this
    # is a plain full-tile copy.
    o_ref[...] = x_ref[:, : o_ref.shape[-1]]


def _round_up(x: int, m: int) -> int:
    return ((x + m - 1) // m) * m


def _default_tile_byte_budget() -> int:
    """Per-generation target bytes for one (input) tile."""
    try:
        kind = jax.devices()[0].device_kind.lower()
    except Exception:  # pragma: no cover - defensive
        kind = ""
    if "v7" in kind or "7x" in kind:
        return 8 << 20   # 3.2 TB/s HBM: long DMAs needed to hide step cost
    if "v6" in kind:
        return 4 << 20
    return 2 << 20       # v5e / unknown: conservative


def chomp1d(x: jax.Array, chomp_size: int, *, tile_byte_budget=None) -> jax.Array:
    """Pallas implementation of Chomp1d.forward: x[:, :, :-chomp_size]."""
    assert chomp_size > 0, "chomp_size must be positive"
    n, c, l = x.shape
    l_out = l - chomp_size
    assert l_out > 0, "chomp_size must be smaller than the sequence length"

    # NOTE: for tiny tensors or when this op sits between other fusible XLA
    # ops, a plain `x[:, :, :l_out]` slice will fuse and beat any standalone
    # kernel; this is the explicit-Pallas version of the same copy.

    # Flatten (N, C, L) -> (N*C, L): free row-major reshape that packs vregs
    # fully even for small channel counts (C = 4..64 in TCNs).
    rows = n * c
    x2 = x.reshape(rows, l)

    itemsize = jnp.dtype(x.dtype).itemsize
    sublane = max(8, 32 // max(1, itemsize))  # 8 (f32) / 16 (bf16) / 32 (i8)

    budget = tile_byte_budget if tile_byte_budget is not None else _default_tile_byte_budget()
    budget = max(int(budget), sublane * 128 * itemsize)  # never below one vreg tile

    rows_rounded = _round_up(rows, sublane)

    # ------------------------------------------------------------------ tiles
    full_lane = (sublane * l * itemsize) <= budget
    if full_lane:
        # Full-row tiles: input block (tr, L), output block (tr, L_out).
        tl_in, tl_out = l, l_out
        tr = max(sublane, (budget // (l * itemsize)) // sublane * sublane)
        if rows > sublane:
            # Keep >= 2 row blocks so both v7x TensorCores get a share.
            tr = min(tr, max(sublane, _round_up((rows + 1) // 2, sublane)))
        tr = min(tr, rows_rounded)

        grid = (pl.cdiv(rows, tr),)
        in_specs = [pl.BlockSpec((tr, tl_in), lambda i: (i, 0))]
        out_specs = pl.BlockSpec((tr, tl_out), lambda i: (i, 0))
        semantics = ("parallel",)
    else:
        # Sequence too long for a full row within budget: 2-D grid with
        # 128-aligned lane tiles (ragged edges masked by Pallas), shrinking
        # the row tile before the lane tile.
        tl = max(128, (budget // (sublane * itemsize)) // 128 * 128)
        tl = min(tl, _round_up(l_out, 128))
        tr = max(sublane, (budget // (tl * itemsize)) // sublane * sublane)
        tr = min(tr, rows_rounded)
        tl_in = tl_out = tl

        grid = (pl.cdiv(rows, tr), pl.cdiv(l_out, tl))
        in_specs = [pl.BlockSpec((tr, tl), lambda i, j: (i, j))]
        out_specs = pl.BlockSpec((tr, tl), lambda i, j: (i, j))
        semantics = ("parallel", "parallel")

    # Double-buffered input + output tiles, plus headroom; capped well under
    # v7x's 64 MiB physical VMEM and safely above v5e's 16 MiB scoped default.
    vmem_needed = 2 * (tr * tl_in + tr * tl_out) * itemsize
    vmem_limit = int(min(48 << 20, max(32 << 20, vmem_needed + (8 << 20))))

    out2 = pl.pallas_call(
        _chomp_copy_kernel,
        out_shape=jax.ShapeDtypeStruct((rows, l_out), x.dtype),
        grid_spec=pltpu.PrefetchScalarGridSpec(
            num_scalar_prefetch=0,
            grid=grid,
            in_specs=in_specs,
            out_specs=out_specs,
        ),
        compiler_params=pltpu.CompilerParams(
            dimension_semantics=semantics,
            vmem_limit_bytes=vmem_limit,
        ),
        cost_estimate=pl.CostEstimate(
            flops=0,
            transcendentals=0,
            bytes_accessed=2 * rows * l_out * itemsize,
        ),
    )(x2)

    return out2.reshape(n, c, l_out)


if __name__ == "__main__":
    key = jax.random.PRNGKey(0)

    # Small deterministic example consistent with a TCN activation tensor:
    # batch=2, channels=4, seq_len=16, chomp_size=3 ((kernel_size-1)*dilation).
    N, C, L = 2, 4, 16
    CHOMP = 3
    x = jax.random.normal(key, (N, C, L), dtype=jnp.float32)

    y = chomp1d(x, CHOMP)
    y = jax.block_until_ready(y)

    y_ref = x[:, :, :-CHOMP]
    assert y.shape == (N, C, L - CHOMP), y.shape
    assert y.dtype == x.dtype
    assert jnp.array_equal(y, y_ref), "Pallas Chomp1d output mismatch (small case)"

    # Full-row (1-D grid) path with ragged row blocks: rows=15 -> tr=8, 2 blocks.
    key2 = jax.random.PRNGKey(1)
    x2 = jax.random.normal(key2, (3, 5, 1408), dtype=jnp.float32)
    y2 = jax.block_until_ready(chomp1d(x2, 100))
    assert jnp.array_equal(y2, x2[:, :, :-100]), "Pallas Chomp1d mismatch (full-row case)"

    # Force the 2-D tiled fallback path (tiny byte budget) to exercise ragged
    # 128-aligned lane tiles and masked edge stores.
    y3 = jax.block_until_ready(chomp1d(x2, 100, tile_byte_budget=16 * 1024))
    assert jnp.array_equal(y3, x2[:, :, :-100]), "Pallas Chomp1d mismatch (2-D tiled case)"

    # bf16 case: checks dtype-aware (byte-budget) tiling and sublane packing.
    key3 = jax.random.PRNGKey(2)
    x4 = jax.random.normal(key3, (4, 8, 48), dtype=jnp.bfloat16)
    y4 = jax.block_until_ready(chomp1d(x4, 5))
    assert jnp.array_equal(y4, x4[:, :, :-5]), "Pallas Chomp1d mismatch (bf16 case)"

    print("KERNEL_OK")
</pallas_src>

<mosaic_0001>
module attributes {stable_mosaic.version = 11 : i64} {
  func.func @_chomp_copy_kernel(%arg0: i32, %arg1: memref<8x16xf32, #tpu.memory_space<vmem>>, %arg2: memref<8x13xf32, #tpu.memory_space<vmem>>) attributes {dimension_semantics = [#tpu.dimension_semantics<parallel>], iteration_bounds = array<i64: 1>, scalar_prefetch = 0 : i64, scratch_operands = 0 : i64, tpu.core_type = #tpu.core_type<tc>, window_params = [{transform_indices = @transform_0, window_bounds = array<i64: 8, 16>}, {transform_indices = @transform_1, window_bounds = array<i64: 8, 13>}]} {
    %c0 = arith.constant 0 : index
    %c0_0 = arith.constant 0 : index
    %0 = vector.load %arg1[%c0, %c0_0] : memref<8x16xf32, #tpu.memory_space<vmem>>, vector<8x13xf32>
    %c0_1 = arith.constant 0 : index
    %c0_2 = arith.constant 0 : index
    %1 = vector.load %arg2[%c0_1, %c0_2] : memref<8x13xf32, #tpu.memory_space<vmem>>, vector<8x13xf32>
    tpu.vector_store %arg2[%c0_1, %c0_2], %0 {strides = array<i32>} : memref<8x13xf32, #tpu.memory_space<vmem>>, vector<8x13xf32>,
    return
  }
  func.func @transform_0(%arg0: i32) -> (i32, i32) {
    %c0_i32 = arith.constant 0 : i32
    %c0_i32_0 = arith.constant 0 : i32
    return %arg0, %c0_i32 : i32, i32
  }
  func.func @transform_1(%arg0: i32) -> (i32, i32) {
    %c0_i32 = arith.constant 0 : i32
    %c0_i32_0 = arith.constant 0 : i32
    return %arg0, %c0_i32 : i32, i32
  }
}

</mosaic_0001>

<llo_original>
// kernel: tpu_custom_call.1
$region0: #{tpu_custom_call.1}
  #allocation0 [shape = 'u32[]', space=smem, size = 0x4, offset = 0x4, fixed_abs, tag = 'smem constant byte address 0x4 - core index']
  #allocation1 [shape = 'u32[72,128]{1,0:T(1,128)}', space=vmem, size = 0x9000, scoped, tag = 'internal scratch']
  %s0 = inlined_call_operand.hbm [shape: f32[8,16], index: 0, kind: input, shape index: {}]
  %s1 = inlined_call_operand.hbm [shape: f32[8,13], index: 1, kind: output, shape index: {}]
  %s2 = sld [smem:[#allocation0]]
  $region18: #{tpu_custom_call.1} parent=0
    _
  %s4 = ssub.s32 1, %s2
  %s5 = scalar_select 0, %s4, %s2
  $region1: #{tpu_custom_call.1} parent=0
    #allocation2 [shape = 'u8[4096]{0}', space=vmem, size = 0x1000, scoped, tag = 'input window, operand 0, single buffered']
    #allocation3 [shape = 's32[1]{0}', space=sflag, size = 0x4, scoped, tag = 'scoped memory for tpu_custom_call.1']
    #allocation4 [shape = 's32[1]{0}', space=sflag, size = 0x4, scoped, tag = 'scoped memory for tpu_custom_call.1']
    #allocation5 [shape = 'u8[4096]{0}', space=vmem, size = 0x1000, scoped, tag = 'output window, operand 0, single buffered']
    %6 = vsyncpa [#allocation3], 0
    %7 = vsyncpa [#allocation4], 0
    // Predicated region
    $region2: #{tpu_custom_call.1} parent=1 // pred_check
      _
    $region3: #{tpu_custom_call.1} parent=1 // pred_check_branch
      %9 = sbr.rel (0) target = $region5
    $region4: #{tpu_custom_call.1} parent=1 // pred_region
      %11 = vsyncadd [#allocation3], 0
      %s13 = sshll.u32 %s0, 4
      %s14 = int_to_ptr.hbm [resolvable:$true] %s13
      %s15 = sshll.u32 [#allocation2], 4
      %s16 = int_to_ptr.vmem [resolvable:$true] %s15
      %18 = dma.hbm_to_vmem [thread:$0]  %s14, 128, %s16, [#allocation3]
    $region5: #{tpu_custom_call.1} parent=1 // pred_fallthru
      _
    // Predicated region
    $region6: #{tpu_custom_call.1} parent=1 // pred_check
      _
    $region7: #{tpu_custom_call.1} parent=1 // pred_check_branch
      %20 = sbr.rel (0) target = $region9
    $region8: #{tpu_custom_call.1} parent=1 // pred_region
      %22 = dma.done [#allocation3], 128
    $region9: #{tpu_custom_call.1} parent=1 // pred_fallthru
      _
    %v23 = vld [vmem:[#allocation2] sm:$0xff]
    %vm24 = vcmask 105472
    %25 = vst.msk [vmem:[#allocation5] sm:$0xff] %vm24, %v23
    // Predicated region
    $region10: #{tpu_custom_call.1} parent=1 // pred_check
      _
    $region11: #{tpu_custom_call.1} parent=1 // pred_check_branch
      %27 = sbr.rel (0) target = $region13
    $region12: #{tpu_custom_call.1} parent=1 // pred_region
      %29 = vsyncadd [#allocation4], 0
      %s31 = sshll.u32 [#allocation5], 4
      %s32 = int_to_ptr.vmem [resolvable:$true] %s31
      %s33 = sshll.u32 %s1, 4
      %s34 = int_to_ptr.hbm [resolvable:$true] %s33
      %36 = dma.vmem_to_hbm [thread:$0]  %s32, 128, %s34, [#allocation4]
    $region13: #{tpu_custom_call.1} parent=1 // pred_fallthru
      _
    // Predicated region
    $region14: #{tpu_custom_call.1} parent=1 // pred_check
      _
    $region15: #{tpu_custom_call.1} parent=1 // pred_check_branch
      %38 = sbr.rel (0) target = $region17
    $region16: #{tpu_custom_call.1} parent=1 // pred_region
      %40 = dma.done [#allocation4], 128
    $region17: #{tpu_custom_call.1} parent=1 // pred_fallthru
      _
    %41 = vsyncpa [#allocation3], 1
    %42 = vsyncpa [#allocation4], 1

</llo_original>
